<compile_context>
chip_gen: v5e
topology: v5e:2x2
jax: 0.10.0
libtpu: 0.0.40
codegen_flags: <defaults>
</compile_context>

<pallas_src>
import functools

import jax
import jax.numpy as jnp
from jax import lax
from jax.experimental import pallas as pl
from jax.experimental.pallas import tpu as pltpu


def _conv_mfm_kernel(x_ref, w_ref, b_ref, o_ref, *, KH, KW, Wp, Lw):
    # x_ref: (1, Cin_p, Lflat)   flat padded image, channels on sublanes
    # w_ref: (2, Cout, KH*KW*Cin_p)   pre-split / pre-reshaped conv weights
    # b_ref: (2, Cout, 1)
    # o_ref: (1, Cout, Lw)        Lw = Ho * Wp  (wide rows, lane-dense)
    x = x_ref[0]                                    # (Cin_p, Lflat)

    # In-kernel im2col: each tap is a static lane-offset slice of the flat
    # image; Cin_p is a sublane multiple so the concat is aligned vreg stacking.
    pieces = []
    for kh in range(KH):
        for kw in range(KW):
            off = kh * Wp + kw
            pieces.append(x[:, off:off + Lw])       # (Cin_p, Lw)
    slab = jnp.concatenate(pieces, axis=0)          # (KH*KW*Cin_p, Lw)

    # One big-K MXU dot per MFM half, then an element-wise VPU max.
    acc_a = jnp.dot(w_ref[0], slab, preferred_element_type=jnp.float32) + b_ref[0]
    acc_b = jnp.dot(w_ref[1], slab, preferred_element_type=jnp.float32) + b_ref[1]
    o_ref[0] = jnp.maximum(acc_a, acc_b).astype(o_ref.dtype)


def conv2d_mfm2_1(x_nchw, w_oihw, bias, *, stride=1, padding=1):
    """Forward of _Conv2dMFM2_1. x: (N, Cin, H, W) -> (N, Cout, Ho, Wo)."""
    assert stride == 1  # TODO(synk): general stride needs strided tap offsets
    N, Cin, H, W = x_nchw.shape
    C2, Cin_w, KH, KW = w_oihw.shape
    assert Cin_w == Cin and C2 % 2 == 0
    Cout = C2 // 2
    Hp = H + 2 * padding
    Wp = W + 2 * padding
    Ho = Hp - KH + 1
    Wo = Wp - KW + 1
    Cin_p = max(8, -(-Cin // 8) * 8)                # channel pad -> sublane multiple
    Lw = Ho * Wp                                    # wide (junk-carrying) row length

    # Single fused pad: channels to Cin_p, conv spatial padding, plus extra
    # bottom row(s) so the flat view is long enough for the largest tap offset.
    extra_rows = -(-(KW - 1) // Wp) if KW > 1 else 0
    x_p = jnp.pad(x_nchw, ((0, 0), (0, Cin_p - Cin),
                           (padding, padding + extra_rows),
                           (padding, padding)))
    Lflat = (Hp + extra_rows) * Wp
    x_flat = x_p.reshape(N, Cin_p, Lflat)           # free reshape (row-major)

    # Weights: (2*Cout, Cin, KH, KW) -> (2, Cout, KH*KW*Cin_p),
    # K ordered as (kh, kw) outer, channel inner -- matches the slab.
    w_t = jnp.transpose(w_oihw, (0, 2, 3, 1))                       # tiny tensor
    w_t = jnp.pad(w_t, ((0, 0), (0, 0), (0, 0), (0, Cin_p - Cin)))
    w2 = w_t.reshape(2, Cout, KH * KW * Cin_p)
    b2 = bias.reshape(2, Cout, 1)

    kernel = functools.partial(_conv_mfm_kernel, KH=KH, KW=KW, Wp=Wp, Lw=Lw)

    out_wide = pl.pallas_call(
        kernel,
        out_shape=jax.ShapeDtypeStruct((N, Cout, Lw), x_nchw.dtype),
        grid_spec=pltpu.PrefetchScalarGridSpec(
            num_scalar_prefetch=0,
            grid=(N,),
            in_specs=[
                pl.BlockSpec((1, Cin_p, Lflat), lambda n: (n, 0, 0)),
                pl.BlockSpec((2, Cout, KH * KW * Cin_p), lambda n: (0, 0, 0)),
                pl.BlockSpec((2, Cout, 1), lambda n: (0, 0, 0)),
            ],
            out_specs=pl.BlockSpec((1, Cout, Lw), lambda n: (n, 0, 0)),
        ),
        compiler_params=pltpu.CompilerParams(
            dimension_semantics=("parallel",),
            vmem_limit_bytes=32 * 1024 * 1024),
    )(x_flat, w2, b2)

    # Wide rows carry Wp columns (the last KW-1 are windows hanging off the
    # right edge); reshape is free, the slice is a tiny pass over the output,
    # and the result is already NCHW -- no transpose.
    return out_wide.reshape(N, Cout, Ho, Wp)[..., :Wo]


def _reference(x_nchw, w_oihw, bias, *, padding=1):
    """Pure-JAX reference mirroring the PyTorch module."""
    conv = lax.conv_general_dilated(
        x_nchw, w_oihw, window_strides=(1, 1),
        padding=[(padding, padding), (padding, padding)],
        dimension_numbers=("NCHW", "OIHW", "NCHW"))
    conv = conv + bias[None, :, None, None]
    Cout = w_oihw.shape[0] // 2
    return jnp.maximum(conv[:, :Cout], conv[:, Cout:])


if __name__ == "__main__":
    key = jax.random.PRNGKey(0)
    k_x, k_w, k_b = jax.random.split(key, 3)

    # Small shapes: N=2, in_channels=4, out_channels=8, spatial 16x16, k=3, pad=1.
    N, Cin, H, W = 2, 4, 16, 16
    Cout, KH, KW = 8, 3, 3

    x = jax.random.normal(k_x, (N, Cin, H, W), dtype=jnp.float32)
    fan_in = Cin * KH * KW
    w = jax.random.normal(k_w, (2 * Cout, Cin, KH, KW), dtype=jnp.float32) / jnp.sqrt(fan_in)
    b = 0.1 * jax.random.normal(k_b, (2 * Cout,), dtype=jnp.float32)

    fwd = jax.jit(lambda xx, ww, bb: conv2d_mfm2_1(xx, ww, bb, stride=1, padding=1))
    out = jax.block_until_ready(fwd(x, w, b))

    ref = jax.block_until_ready(_reference(x, w, b, padding=1))
    assert out.shape == (N, Cout, H, W), out.shape
    assert jnp.allclose(out, ref, atol=1e-4, rtol=1e-4), "mismatch vs JAX reference"

    print("KERNEL_OK")
</pallas_src>

<mosaic_0001>
module attributes {stable_mosaic.version = 11 : i64} {
  func.func @_conv_mfm_kernel(%arg0: i32, %arg1: memref<1x8x342xf32, #tpu.memory_space<vmem>>, %arg2: memref<2x8x72xf32, #tpu.memory_space<vmem>>, %arg3: memref<2x8x1xf32, #tpu.memory_space<vmem>>, %arg4: memref<1x8x288xf32, #tpu.memory_space<vmem>>) attributes {dimension_semantics = [#tpu.dimension_semantics<parallel>], iteration_bounds = array<i64: 2>, scalar_prefetch = 0 : i64, scratch_operands = 0 : i64, tpu.core_type = #tpu.core_type<tc>, window_params = [{transform_indices = @transform_0, window_bounds = array<i64: 1, 8, 342>}, {pipeline_mode = #tpu.pipeline_mode<synchronous>, transform_indices = @transform_1, window_bounds = array<i64: 2, 8, 72>}, {pipeline_mode = #tpu.pipeline_mode<synchronous>, transform_indices = @transform_2, window_bounds = array<i64: 2, 8, 1>}, {transform_indices = @transform_3, window_bounds = array<i64: 1, 8, 288>}]} {
    %c0 = arith.constant 0 : index
    %c0_0 = arith.constant 0 : index
    %c0_1 = arith.constant 0 : index
    %0 = vector.load %arg1[%c0, %c0_0, %c0_1] : memref<1x8x342xf32, #tpu.memory_space<vmem>>, vector<1x8x342xf32>
    %1 = vector.shape_cast %0 : vector<1x8x342xf32> to vector<8x342xf32>
    %2 = vector.extract_strided_slice %1 {offsets = [0, 0], sizes = [8, 288], strides = [1, 1]} : vector<8x342xf32> to vector<8x288xf32>
    %3 = vector.extract_strided_slice %1 {offsets = [0, 1], sizes = [8, 288], strides = [1, 1]} : vector<8x342xf32> to vector<8x288xf32>
    %4 = vector.extract_strided_slice %1 {offsets = [0, 2], sizes = [8, 288], strides = [1, 1]} : vector<8x342xf32> to vector<8x288xf32>
    %5 = vector.extract_strided_slice %1 {offsets = [0, 18], sizes = [8, 288], strides = [1, 1]} : vector<8x342xf32> to vector<8x288xf32>
    %6 = vector.extract_strided_slice %1 {offsets = [0, 19], sizes = [8, 288], strides = [1, 1]} : vector<8x342xf32> to vector<8x288xf32>
    %7 = vector.extract_strided_slice %1 {offsets = [0, 20], sizes = [8, 288], strides = [1, 1]} : vector<8x342xf32> to vector<8x288xf32>
    %8 = vector.extract_strided_slice %1 {offsets = [0, 36], sizes = [8, 288], strides = [1, 1]} : vector<8x342xf32> to vector<8x288xf32>
    %9 = vector.extract_strided_slice %1 {offsets = [0, 37], sizes = [8, 288], strides = [1, 1]} : vector<8x342xf32> to vector<8x288xf32>
    %10 = vector.extract_strided_slice %1 {offsets = [0, 38], sizes = [8, 288], strides = [1, 1]} : vector<8x342xf32> to vector<8x288xf32>
    %11 = tpu.concatenate %2, %3, %4, %5, %6, %7, %8, %9, %10 in 0 : vector<8x288xf32>, vector<8x288xf32>, vector<8x288xf32>, vector<8x288xf32>, vector<8x288xf32>, vector<8x288xf32>, vector<8x288xf32>, vector<8x288xf32>, vector<8x288xf32> -> vector<72x288xf32>
    %c0_2 = arith.constant 0 : index
    %c0_3 = arith.constant 0 : index
    %c0_4 = arith.constant 0 : index
    %12 = vector.load %arg2[%c0_2, %c0_3, %c0_4] : memref<2x8x72xf32, #tpu.memory_space<vmem>>, vector<1x8x72xf32>
    %13 = vector.shape_cast %12 : vector<1x8x72xf32> to vector<8x72xf32>
    %cst = arith.constant dense<0.000000e+00> : vector<8x288xf32>
    %14 = tpu.matmul %13, %11, %cst {dimension_numbers = #tpu.dot_dimension_numbers<[1], [0], [0], [1], [0, 0, 1, 1], [], []>} : vector<8x72xf32>, vector<72x288xf32>, vector<8x288xf32> -> vector<8x288xf32>
    %c0_5 = arith.constant 0 : index
    %c0_6 = arith.constant 0 : index
    %c0_7 = arith.constant 0 : index
    %15 = vector.load %arg3[%c0_5, %c0_6, %c0_7] : memref<2x8x1xf32, #tpu.memory_space<vmem>>, vector<1x8x1xf32>
    %16 = vector.shape_cast %15 : vector<1x8x1xf32> to vector<8x1xf32>
    %17 = vector.broadcast %16 : vector<8x1xf32> to vector<8x288xf32>
    %18 = arith.addf %14, %17 : vector<8x288xf32>
    %c1 = arith.constant 1 : index
    %c0_8 = arith.constant 0 : index
    %c0_9 = arith.constant 0 : index
    %19 = vector.load %arg2[%c1, %c0_8, %c0_9] : memref<2x8x72xf32, #tpu.memory_space<vmem>>, vector<1x8x72xf32>
    %20 = vector.shape_cast %19 : vector<1x8x72xf32> to vector<8x72xf32>
    %cst_10 = arith.constant dense<0.000000e+00> : vector<8x288xf32>
    %21 = tpu.matmul %20, %11, %cst_10 {dimension_numbers = #tpu.dot_dimension_numbers<[1], [0], [0], [1], [0, 0, 1, 1], [], []>} : vector<8x72xf32>, vector<72x288xf32>, vector<8x288xf32> -> vector<8x288xf32>
    %c1_11 = arith.constant 1 : index
    %c0_12 = arith.constant 0 : index
    %c0_13 = arith.constant 0 : index
    %22 = vector.load %arg3[%c1_11, %c0_12, %c0_13] : memref<2x8x1xf32, #tpu.memory_space<vmem>>, vector<1x8x1xf32>
    %23 = vector.shape_cast %22 : vector<1x8x1xf32> to vector<8x1xf32>
    %24 = vector.broadcast %23 : vector<8x1xf32> to vector<8x288xf32>
    %25 = arith.addf %21, %24 : vector<8x288xf32>
    %26 = arith.maximumf %18, %25 : vector<8x288xf32>
    %c0_14 = arith.constant 0 : index
    %c0_15 = arith.constant 0 : index
    %c0_16 = arith.constant 0 : index
    %27 = vector.load %arg4[%c0_14, %c0_15, %c0_16] : memref<1x8x288xf32, #tpu.memory_space<vmem>>, vector<1x8x288xf32>
    %28 = vector.shape_cast %27 : vector<1x8x288xf32> to vector<8x288xf32>
    %29 = vector.shape_cast %26 : vector<8x288xf32> to vector<1x8x288xf32>
    tpu.vector_store %arg4[%c0_14, %c0_15, %c0_16], %29 {strides = array<i32>} : memref<1x8x288xf32, #tpu.memory_space<vmem>>, vector<1x8x288xf32>,
    return
  }
  func.func @transform_0(%arg0: i32) -> (i32, i32, i32) {
    %c0_i32 = arith.constant 0 : i32
    %c0_i32_0 = arith.constant 0 : i32
    %c0_i32_1 = arith.constant 0 : i32
    return %arg0, %c0_i32, %c0_i32_0 : i32, i32, i32
  }
  func.func @transform_1(%arg0: i32) -> (i32, i32, i32) {
    %c0_i32 = arith.constant 0 : i32
    %c0_i32_0 = arith.constant 0 : i32
    %c0_i32_1 = arith.constant 0 : i32
    %c0_i32_2 = arith.constant 0 : i32
    return %c0_i32, %c0_i32_0, %c0_i32_1 : i32, i32, i32
  }
  func.func @transform_2(%arg0: i32) -> (i32, i32, i32) {
    %c0_i32 = arith.constant 0 : i32
    %c0_i32_0 = arith.constant 0 : i32
    %c0_i32_1 = arith.constant 0 : i32
    %c0_i32_2 = arith.constant 0 : i32
    return %c0_i32, %c0_i32_0, %c0_i32_1 : i32, i32, i32
  }
  func.func @transform_3(%arg0: i32) -> (i32, i32, i32) {
    %c0_i32 = arith.constant 0 : i32
    %c0_i32_0 = arith.constant 0 : i32
    %c0_i32_1 = arith.constant 0 : i32
    return %arg0, %c0_i32, %c0_i32_0 : i32, i32, i32
  }
}

</mosaic_0001>

<llo_original>
// kernel: _lambda_.1
$region0: #{_lambda_.1}
  #allocation0 [shape = 'u32[]', space=smem, size = 0x4, offset = 0x4, fixed_abs, tag = 'smem constant byte address 0x4 - core index']
  #allocation1 [shape = 'u32[72,128]{1,0:T(1,128)}', space=vmem, size = 0x9000, scoped, tag = 'internal scratch']
  %s0 = inlined_call_operand.vmem [shape: f32[2,8,342], index: 0, kind: input, shape index: {}]
  %s1 = inlined_call_operand.vmem [shape: f32[2,8,72], index: 1, kind: input, shape index: {}]
  %s2 = inlined_call_operand.vmem [shape: f32[2,8,1], index: 2, kind: input, shape index: {}]
  %s3 = inlined_call_operand.vmem [shape: f32[2,8,288], index: 3, kind: output, shape index: {}]
  %s4 = sld [smem:[#allocation0]]
  $region45: #{_lambda_.1} parent=0
    _
  %s6 = ssub.s32 1, %s4
  %s7 = scalar_select 0, %s6, %s4
  loop: start=0, step=1, limit=4
  $region2: #{_lambda_.1} parent=0 // loop_pre_header
    _
  $region3: #{_lambda_.1} parent=0 // loop_header
    %s9 = sphi 0, %s13
    %p10 = scmp.ge.s32.totalorder %s9, 4
    %s19 = sphi 0, %s21
    %s22 = sphi 0, %s19
    %s23 = sphi 0, %s22
    %s39 = sphi 0, %s23
    %s43 = sphi 0, %s43
    %s45 = sphi 0, %s43
    %s46 = sphi 0, %s45
    %s60 = sphi 0, %s46
    %s64 = sphi 0, %s64
    %s66 = sphi 0, %s64
    %s67 = sphi 0, %s66
    %s81 = sphi 0, %s67
    %s87 = sphi 0, %s89
    %s90 = sphi 0, %s87
    %s91 = sphi 0, %s90
    %s107 = sphi 0, %s91
  $region4: #{_lambda_.1} parent=0 // loop_header_branch
    %12 = sbr.rel (%p10) target = $region8
  $region5: #{_lambda_.1} parent=0 // loop_body
    %s14 = ssub.s32 %s9, 1
    %s15 = ssub.s32 %s9, 2
    %s16 = sadd.s32 %s9, 1
    %s17 = ssub.s32 %s9, %s16
    %p18 = scmp.eq.s32.totalorder %s17, 0
    %s20 = sadd.s32 %s19, 1
    %s21 = scalar_select %p18, %s19, %s20
    %p24 = pneg %p18
    %p25 = scmp.eq.s32.totalorder %s9, 1
    %p26 = por %p24, %p25
    %p27 = scmp.ne.s32.totalorder %s19, %s22
    %p28 = scmp.eq.s32.totalorder %s9, 0
    %p29 = por %p27, %p28
    %p30 = scmp.ne.s32.totalorder %s19, %s22
    %p31 = scmp.eq.s32.totalorder %s14, 1
    %p32 = por %p30, %p31
    %p33 = scmp.ne.s32.totalorder %s22, %s23
    %p34 = scmp.eq.s32.totalorder %s14, 0
    %p35 = por %p33, %p34
    %p36 = scmp.ne.s32.totalorder %s22, %s23
    %p37 = scmp.eq.s32.totalorder %s15, 1
    %p38 = por %p36, %p37
    %p40 = scmp.ne.s32.totalorder %s23, %s39
    %p41 = scmp.eq.s32.totalorder %s15, 0
    %p42 = por %p40, %p41
    %s44 = sadd.s32 %s43, 1
    %p47 = scmp.eq.s32.totalorder %s9, 1
    %p48 = scmp.ne.s32.totalorder %s43, %s45
    %p49 = scmp.eq.s32.totalorder %s9, 0
    %p50 = por %p48, %p49
    %p51 = scmp.ne.s32.totalorder %s43, %s45
    %p52 = scmp.eq.s32.totalorder %s14, 1
    %p53 = por %p51, %p52
    %p54 = scmp.ne.s32.totalorder %s45, %s46
    %p55 = scmp.eq.s32.totalorder %s14, 0
    %p56 = por %p54, %p55
    %p57 = scmp.ne.s32.totalorder %s45, %s46
    %p58 = scmp.eq.s32.totalorder %s15, 1
    %p59 = por %p57, %p58
    %p61 = scmp.ne.s32.totalorder %s46, %s60
    %p62 = scmp.eq.s32.totalorder %s15, 0
    %p63 = por %p61, %p62
    %s65 = sadd.s32 %s64, 1
    %p68 = scmp.eq.s32.totalorder %s9, 1
    %p69 = scmp.ne.s32.totalorder %s64, %s66
    %p70 = scmp.eq.s32.totalorder %s9, 0
    %p71 = por %p69, %p70
    %p72 = scmp.ne.s32.totalorder %s64, %s66
    %p73 = scmp.eq.s32.totalorder %s14, 1
    %p74 = por %p72, %p73
    %p75 = scmp.ne.s32.totalorder %s66, %s67
    %p76 = scmp.eq.s32.totalorder %s14, 0
    %p77 = por %p75, %p76
    %p78 = scmp.ne.s32.totalorder %s66, %s67
    %p79 = scmp.eq.s32.totalorder %s15, 1
    %p80 = por %p78, %p79
    %p82 = scmp.ne.s32.totalorder %s67, %s81
    %p83 = scmp.eq.s32.totalorder %s15, 0
    %p84 = por %p82, %p83
    %s85 = ssub.s32 %s9, %s16
    %p86 = scmp.eq.s32.totalorder %s85, 0
    %s88 = sadd.s32 %s87, 1
    %s89 = scalar_select %p86, %s87, %s88
    %p92 = pneg %p86
    %p93 = scmp.eq.s32.totalorder %s9, 1
    %p94 = por %p92, %p93
    %p95 = scmp.ne.s32.totalorder %s87, %s90
    %p96 = scmp.eq.s32.totalorder %s9, 0
    %p97 = por %p95, %p96
    %p98 = scmp.ne.s32.totalorder %s87, %s90
    %p99 = scmp.eq.s32.totalorder %s14, 1
    %p100 = por %p98, %p99
    %p101 = scmp.ne.s32.totalorder %s90, %s91
    %p102 = scmp.eq.s32.totalorder %s14, 0
    %p103 = por %p101, %p102
    %p104 = scmp.ne.s32.totalorder %s90, %s91
    %p105 = scmp.eq.s32.totalorder %s15, 1
    %p106 = por %p104, %p105
    %p108 = scmp.ne.s32.totalorder %s91, %s107
    %p109 = scmp.eq.s32.totalorder %s15, 0
    %p110 = por %p108, %p109
    %p111 = scmp.le.s32.totalorder 1, %s9
    %p112 = scmp.lt.s32.totalorder %s9, 3
    %p113 = pnand %p111, %p112
    %p114 = pneg %p113
    // Predicated region
    $region9: #{_lambda_.1} parent=5 // pred_check
      _
    $region10: #{_lambda_.1} parent=5 // pred_check_branch
      %116 = sbr.rel (%p113) target = $region12
    $region11: #{_lambda_.1} parent=5 // pred_region
      %s117 = ssub.s32 %s9, 1
      // Predicated region
      $region13: #{_lambda_.1} parent=11 // pred_check
        %p118 = pneg %p56
      $region14: #{_lambda_.1} parent=11 // pred_check_branch
        %120 = sbr.rel (%p118) target = $region16
      $region15: #{_lambda_.1} parent=11 // pred_region
        _
      $region16: #{_lambda_.1} parent=11 // pred_fallthru
        _
      // Predicated region
      $region17: #{_lambda_.1} parent=11 // pred_check
        %p121 = pneg %p77
      $region18: #{_lambda_.1} parent=11 // pred_check_branch
        %123 = sbr.rel (%p121) target = $region20
      $region19: #{_lambda_.1} parent=11 // pred_region
        _
      $region20: #{_lambda_.1} parent=11 // pred_fallthru
        _
    $region12: #{_lambda_.1} parent=5 // pred_fallthru
      _
    %p124 = scmp.lt.s32.totalorder %s9, 2
    // Predicated region
    $region21: #{_lambda_.1} parent=5 // pred_check
      %p125 = pneg %p124
    $region22: #{_lambda_.1} parent=5 // pred_check_branch
      %127 = sbr.rel (%p125) target = $region24
    $region23: #{_lambda_.1} parent=5 // pred_region
      // Predicated region
      $region25: #{_lambda_.1} parent=23 // pred_check
        %p128 = pneg %p29
      $region26: #{_lambda_.1} parent=23 // pred_check_branch
        %130 = sbr.rel (%p128) target = $region28
      $region27: #{_lambda_.1} parent=23 // pred_region
        %p131 = scmp.lt.s32.totalorder %s9, 1
        %s132 = scalar_select %p131, %s9, 1
        %s133 = smul.addr %s132, 3
        %s134 = smul.addr %s133, 8
        %s135 = scalar_lea.vmem %s0, %s134
      $region28: #{_lambda_.1} parent=23 // pred_fallthru
        _
    $region24: #{_lambda_.1} parent=5 // pred_fallthru
      _
    %p136 = scmp.le.s32.totalorder 1, %s9
    %p137 = scmp.lt.s32.totalorder %s9, 3
    %p138 = pnand %p136, %p137
    %p139 = pneg %p138
    // Predicated region
    $region29: #{_lambda_.1} parent=5 // pred_check
      _
    $region30: #{_lambda_.1} parent=5 // pred_check_branch
      %141 = sbr.rel (%p138) target = $region32
    $region31: #{_lambda_.1} parent=5 // pred_region
      %s142 = ssub.s32 %s9, 1
      %p143 = scmp.lt.s32.totalorder %s14, 1
      %s144 = scalar_select %p143, %s14, 1
      %s145 = smul.addr %s144, 3
      %s146 = smul.addr %s145, 8
      %s147 = scalar_lea.vmem %s0, %s146
      %p148 = pneg %p35
      %p149 = pneg %p32
      %p150 = pneg %p56
      %p151 = pneg %p53
      %p152 = pneg %p77
      %p153 = pneg %p74
      %p154 = pneg %p103
      %p155 = pneg %p100
      %p156 = scmp.lt.s32.totalorder %s14, 1
      %s157 = scalar_select %p156, %s14, 1
      %s158 = smul.addr %s157, 3
      %s159 = smul.addr %s158, 8
      %s160 = scalar_lea.vmem %s3, %s159
      %p161 = scmp.lt.s32.totalorder %s14, 1
      %s162 = scalar_select %p161, %s14, 1
      %s163 = smul.addr %s162, 3
      %s164 = smul.addr %s163, 8
      %s165 = scalar_lea.vmem %s0, %s164
      %p166 = scmp.lt.s32.totalorder %s14, 1
      %s167 = scalar_select %p166, %s14, 1
      %s168 = smul.addr %s167, 3
      %s169 = smul.addr %s168, 8
      %s170 = scalar_lea.vmem %s3, %s169
      %v171 = vld [vmem:[%s165] sm:$0xff]
      %v172 = vld [vmem:[%s165 + $0x8] sm:$0xff]
      %v173 = vld [vmem:[%s165 + $0x10] sm:$0xff]
      %177 = vrot.lane.b32.xlu0 %v171, 127
      %v178 = vpop.permute.xlu0 %177
      %179 = vrot.lane.b32.xlu0 %v172, 127
      %v180 = vpop.permute.xlu0 %179
      %181 = vrot.lane.b32.xlu0 %v173, 127
      %v182 = vpop.permute.xlu0 %181
      %vm183 = vcmask 1039360
      %v184 = vsel %vm183, %v178, %v180
      %v185 = vsel %vm183, %v180, %v182
      %189 = vrot.lane.b32.xlu0 %v171, 126
      %v190 = vpop.permute.xlu0 %189
      %191 = vrot.lane.b32.xlu0 %v172, 126
      %v192 = vpop.permute.xlu0 %191
      %193 = vrot.lane.b32.xlu0 %v173, 126
      %v194 = vpop.permute.xlu0 %193
      %vm195 = vcmask 1031168
      %v196 = vsel %vm195, %v190, %v192
      %v197 = vsel %vm195, %v192, %v194
      %201 = vrot.lane.b32.xlu0 %v171, 110
      %v202 = vpop.permute.xlu0 %201
      %203 = vrot.lane.b32.xlu0 %v172, 110
      %v204 = vpop.permute.xlu0 %203
      %205 = vrot.lane.b32.xlu0 %v173, 110
      %v206 = vpop.permute.xlu0 %205
      %vm207 = vcmask 900096
      %v208 = vsel %vm207, %v202, %v204
      %v209 = vsel %vm207, %v204, %v206
      %213 = vrot.lane.b32.xlu0 %v171, 109
      %v214 = vpop.permute.xlu0 %213
      %215 = vrot.lane.b32.xlu0 %v172, 109
      %v216 = vpop.permute.xlu0 %215
      %217 = vrot.lane.b32.xlu0 %v173, 109
      %v218 = vpop.permute.xlu0 %217
      %vm219 = vcmask 891904
      %v220 = vsel %vm219, %v214, %v216
      %v221 = vsel %vm219, %v216, %v218
      %225 = vrot.lane.b32.xlu0 %v171, 108
      %v226 = vpop.permute.xlu0 %225
      %227 = vrot.lane.b32.xlu0 %v172, 108
      %v228 = vpop.permute.xlu0 %227
      %229 = vrot.lane.b32.xlu0 %v173, 108
      %v230 = vpop.permute.xlu0 %229
      %vm231 = vcmask 883712
      %v232 = vsel %vm231, %v226, %v228
      %v233 = vsel %vm231, %v228, %v230
      %237 = vrot.lane.b32.xlu0 %v171, 92
      %v238 = vpop.permute.xlu0 %237
      %239 = vrot.lane.b32.xlu0 %v172, 92
      %v240 = vpop.permute.xlu0 %239
      %241 = vrot.lane.b32.xlu0 %v173, 92
      %v242 = vpop.permute.xlu0 %241
      %vm243 = vcmask 752640
      %v244 = vsel %vm243, %v238, %v240
      %v245 = vsel %vm243, %v240, %v242
      %249 = vrot.lane.b32.xlu0 %v171, 91
      %v250 = vpop.permute.xlu0 %249
      %251 = vrot.lane.b32.xlu0 %v172, 91
      %v252 = vpop.permute.xlu0 %251
      %253 = vrot.lane.b32.xlu0 %v173, 91
      %v254 = vpop.permute.xlu0 %253
      %vm255 = vcmask 744448
      %v256 = vsel %vm255, %v250, %v252
      %v257 = vsel %vm255, %v252, %v254
      %261 = vrot.lane.b32.xlu0 %v171, 90
      %v262 = vpop.permute.xlu0 %261
      %263 = vrot.lane.b32.xlu0 %v172, 90
      %v264 = vpop.permute.xlu0 %263
      %265 = vrot.lane.b32.xlu0 %v173, 90
      %v266 = vpop.permute.xlu0 %265
      %vm267 = vcmask 736256
      %v268 = vsel %vm267, %v262, %v264
      %v269 = vsel %vm267, %v264, %v266
      %v273 = vld [vmem:[%s1] sm:$0xff]
      %v274 = vld [vmem:[%s2] sm:$0xff]
      %276 = vset.pattern.permute.xlu0 0
      %277 = vperm.xlu0 %276, %v274
      %v278 = vpop.permute.xlu0 %277
      %vm280 = vcmask 588800
      %v282 = vsel %vm280, %v273, 0
      %284 = vmatpush.msra.mxu0 0.0
      %285 = vmatpush.msra.mxu0 0.0
      %286 = vmatpush.msra.mxu0 0.0
      %287 = vmatpush.msra.mxu0 0.0
      %288 = vmatpush.msra.mxu0 0.0
      %289 = vmatpush.msra.mxu0 0.0
      %290 = vmatpush.msra.mxu0 0.0
      %291 = vmatpush.msra.mxu0 %v268
      %292 = vmatpush.msra.mxu0 %v256
      %293 = vmatpush.msra.mxu0 %v244
      %294 = vmatpush.msra.mxu0 %v232
      %295 = vmatpush.msra.mxu0 %v220
      %296 = vmatpush.msra.mxu0 %v208
      %297 = vmatpush.msra.mxu0 %v196
      %298 = vmatpush.msra.mxu0 %v184
      %299 = vmatpush.msra.mxu0 %v171
      %300 = vmatmul.f32.gmra.mxu0 %v282
      %v301 = vpop.f32.mrf.mxu0
      %v302 = vadd.f32 %v278, %v301
      %303 = vdwg.mxu0
      %304 = vmatpush.msra.mxu0 0.0
      %305 = vmatpush.msra.mxu0 0.0
      %306 = vmatpush.msra.mxu0 0.0
      %307 = vmatpush.msra.mxu0 0.0
      %308 = vmatpush.msra.mxu0 0.0
      %309 = vmatpush.msra.mxu0 0.0
      %310 = vmatpush.msra.mxu0 0.0
      %311 = vmatpush.msra.mxu0 %v269
      %312 = vmatpush.msra.mxu0 %v257
      %313 = vmatpush.msra.mxu0 %v245
      %314 = vmatpush.msra.mxu0 %v233
      %315 = vmatpush.msra.mxu0 %v221
      %316 = vmatpush.msra.mxu0 %v209
      %317 = vmatpush.msra.mxu0 %v197
      %318 = vmatpush.msra.mxu0 %v185
      %319 = vmatpush.msra.mxu0 %v172
      %320 = vmatmul.f32.gmra.mxu0 %v282
      %v321 = vpop.f32.mrf.mxu0
      %v322 = vadd.f32 %v278, %v321
      %323 = vdwg.mxu0
      %324 = vmatpush.msra.mxu0 0.0
      %325 = vmatpush.msra.mxu0 0.0
      %326 = vmatpush.msra.mxu0 0.0
      %327 = vmatpush.msra.mxu0 0.0
      %328 = vmatpush.msra.mxu0 0.0
      %329 = vmatpush.msra.mxu0 0.0
      %330 = vmatpush.msra.mxu0 0.0
      %331 = vmatpush.msra.mxu0 %v266
      %332 = vmatpush.msra.mxu0 %v254
      %333 = vmatpush.msra.mxu0 %v242
      %334 = vmatpush.msra.mxu0 %v230
      %335 = vmatpush.msra.mxu0 %v218
      %336 = vmatpush.msra.mxu0 %v206
      %337 = vmatpush.msra.mxu0 %v194
      %338 = vmatpush.msra.mxu0 %v182
      %339 = vmatpush.msra.mxu0 %v173
      %340 = vmatmul.f32.gmra.mxu0 %v282
      %v341 = vpop.f32.mrf.mxu0
      %v342 = vadd.f32 %v278, %v341
      %343 = vdwg.mxu0
      %s344 = scalar_lea.vmem %s1, 8
      %v345 = vld [vmem:[%s344] sm:$0xff]
      %s346 = scalar_lea.vmem %s2, 8
      %v347 = vld [vmem:[%s346] sm:$0xff]
      %349 = vset.pattern.permute.xlu0 0
      %350 = vperm.xlu0 %349, %v347
      %v351 = vpop.permute.xlu0 %350
      %v354 = vsel %vm280, %v345, 0
      %356 = vmatpush.msra.mxu0 0.0
      %357 = vmatpush.msra.mxu0 0.0
      %358 = vmatpush.msra.mxu0 0.0
      %359 = vmatpush.msra.mxu0 0.0
      %360 = vmatpush.msra.mxu0 0.0
      %361 = vmatpush.msra.mxu0 0.0
      %362 = vmatpush.msra.mxu0 0.0
      %363 = vmatpush.msra.mxu0 %v268
      %364 = vmatpush.msra.mxu0 %v256
      %365 = vmatpush.msra.mxu0 %v244
      %366 = vmatpush.msra.mxu0 %v232
      %367 = vmatpush.msra.mxu0 %v220
      %368 = vmatpush.msra.mxu0 %v208
      %369 = vmatpush.msra.mxu0 %v196
      %370 = vmatpush.msra.mxu0 %v184
      %371 = vmatpush.msra.mxu0 %v171
      %372 = vmatmul.f32.gmra.mxu0 %v354
      %v373 = vpop.f32.mrf.mxu0
      %v374 = vadd.f32 %v351, %v373
      %375 = vdwg.mxu0
      %376 = vmatpush.msra.mxu0 0.0
      %377 = vmatpush.msra.mxu0 0.0
      %378 = vmatpush.msra.mxu0 0.0
      %379 = vmatpush.msra.mxu0 0.0
      %380 = vmatpush.msra.mxu0 0.0
      %381 = vmatpush.msra.mxu0 0.0
      %382 = vmatpush.msra.mxu0 0.0
      %383 = vmatpush.msra.mxu0 %v269
      %384 = vmatpush.msra.mxu0 %v257
      %385 = vmatpush.msra.mxu0 %v245
      %386 = vmatpush.msra.mxu0 %v233
      %387 = vmatpush.msra.mxu0 %v221
      %388 = vmatpush.msra.mxu0 %v209
      %389 = vmatpush.msra.mxu0 %v197
      %390 = vmatpush.msra.mxu0 %v185
      %391 = vmatpush.msra.mxu0 %v172
      %392 = vmatmul.f32.gmra.mxu0 %v354
      %v393 = vpop.f32.mrf.mxu0
      %v394 = vadd.f32 %v351, %v393
      %395 = vdwg.mxu0
      %396 = vmatpush.msra.mxu0 0.0
      %397 = vmatpush.msra.mxu0 0.0
      %398 = vmatpush.msra.mxu0 0.0
      %399 = vmatpush.msra.mxu0 0.0
      %400 = vmatpush.msra.mxu0 0.0
      %401 = vmatpush.msra.mxu0 0.0
      %402 = vmatpush.msra.mxu0 0.0
      %403 = vmatpush.msra.mxu0 %v266
      %404 = vmatpush.msra.mxu0 %v254
      %405 = vmatpush.msra.mxu0 %v242
      %406 = vmatpush.msra.mxu0 %v230
      %407 = vmatpush.msra.mxu0 %v218
      %408 = vmatpush.msra.mxu0 %v206
      %409 = vmatpush.msra.mxu0 %v194
      %410 = vmatpush.msra.mxu0 %v182
      %411 = vmatpush.msra.mxu0 %v173
      %412 = vmatmul.f32.gmra.mxu0 %v354
      %v413 = vpop.f32.mrf.mxu0
      %v414 = vadd.f32 %v351, %v413
      %415 = vdwg.mxu0
      %v416 = vmax.f32 %v302, %v374
      %v417 = vmax.f32 %v322, %v394
      %v418 = vmax.f32 %v342, %v414
      %419 = vst [vmem:[%s170] sm:$0xff] %v416
      %420 = vst [vmem:[%s170 + $0x8] sm:$0xff] %v417
      %vm421 = vcmask 261120
      %422 = vst.msk [vmem:[%s170 + $0x10] sm:$0xff] %vm421, %v418
      %p423 = scmp.lt.s32.totalorder %s14, 1
      %s424 = scalar_select %p423, %s14, 1
      %s425 = smul.addr %s424, 3
      %s426 = smul.addr %s425, 8
      %s427 = scalar_lea.vmem %s3, %s426
      // Predicated region
      $region33: #{_lambda_.1} parent=31 // pred_check
        %p428 = pneg %p100
      $region34: #{_lambda_.1} parent=31 // pred_check_branch
        %430 = sbr.rel (%p428) target = $region36
      $region35: #{_lambda_.1} parent=31 // pred_region
        _
      $region36: #{_lambda_.1} parent=31 // pred_fallthru
        _
    $region32: #{_lambda_.1} parent=5 // pred_fallthru
      _
    %p431 = scmp.le.s32.totalorder 2, %s9
    // Predicated region
    $region37: #{_lambda_.1} parent=5 // pred_check
      %p432 = pneg %p431
    $region38: #{_lambda_.1} parent=5 // pred_check_branch
      %434 = sbr.rel (%p432) target = $region40
    $region39: #{_lambda_.1} parent=5 // pred_region
      %s435 = ssub.s32 %s9, 2
      // Predicated region
      $region41: #{_lambda_.1} parent=39 // pred_check
        %p436 = pneg %p106
      $region42: #{_lambda_.1} parent=39 // pred_check_branch
        %438 = sbr.rel (%p436) target = $region44
      $region43: #{_lambda_.1} parent=39 // pred_region
        %p439 = scmp.lt.s32.totalorder %s15, 1
        %s440 = scalar_select %p439, %s15, 1
        %s441 = smul.addr %s440, 3
        %s442 = smul.addr %s441, 8
        %s443 = scalar_lea.vmem %s3, %s442
      $region44: #{_lambda_.1} parent=39 // pred_fallthru
        _
    $region40: #{_lambda_.1} parent=5 // pred_fallthru
      _
  $region6: #{_lambda_.1} parent=0 // loop_footer
    %s13 = sadd.s32 1, %s9
  $region7: #{_lambda_.1} parent=0 // loop_footer_branch
    %8 = sbr.rel target = $region3
  $region8: #{_lambda_.1} parent=0 // loop_exit
    _

</llo_original>
